<compile_context>
chip_gen: v7x
topology: tpu7x:2x2x1
jax: 0.10.0
libtpu: 0.0.40
codegen_flags: <defaults>
</compile_context>

<pallas_src>
import functools

import jax
import jax.numpy as jnp
from jax.experimental import pallas as pl
from jax.experimental.pallas import tpu as pltpu


def _round_up(x, m):
    return ((x + m - 1) // m) * m


def _cdiv(a, b):
    return (a + b - 1) // b


def _embed_sum_kernel(idx_ref, tab_ref, out_ref, *, level_offsets, level_sizes):
    """One (t_blk, d_tile) output tile.

    idx_ref: (t_blk, n_lvl) int32 token ids; column k is local to level k.
    tab_ref: (k_rows, d_tile) bf16 stacked per-level tables; level k occupies
             rows [level_offsets[k], level_offsets[k] + level_sizes[k]).
    out_ref: (t_blk, d_tile) = sum_k tab[level_offsets[k] + idx[:, k], :].
    """
    t_blk = idx_ref.shape[0]
    idx = idx_ref[...]
    acc = None
    # Static unroll over the (small) number of levels: per-level one-hot + dot,
    # f32 accumulation.  Offsets/sizes are Python ints -> static, aligned slices.
    for k, (off, nk) in enumerate(zip(level_offsets, level_sizes)):
        tok_iota = jax.lax.broadcasted_iota(jnp.int32, (t_blk, nk), 1)
        onehot = (idx[:, k:k + 1] == tok_iota).astype(tab_ref.dtype)
        part = jnp.dot(onehot, tab_ref[off:off + nk, :],
                       preferred_element_type=jnp.float32)
        acc = part if acc is None else acc + part
    out_ref[...] = acc.astype(out_ref.dtype)


def embed_sum(idx, tab_flat, level_offsets, level_sizes, d_out,
              *, t_blk_max=512, d_tile_max=512, out_dtype=jnp.float32):
    """idx: (T, n_lvl) token ids; column k indexes the rows
    tab_flat[level_offsets[k] : level_offsets[k] + level_sizes[k]].
    Returns (T, d_out) out_dtype = sum_k embed_k(idx[:, k])."""
    T, n_lvl = idx.shape
    assert n_lvl >= 1 and len(level_offsets) >= n_lvl and len(level_sizes) >= n_lvl
    level_offsets = tuple(int(o) for o in level_offsets[:n_lvl])
    level_sizes = tuple(int(s) for s in level_sizes[:n_lvl])
    k_rows = level_offsets[-1] + level_sizes[-1]
    assert tab_flat.shape[0] >= k_rows
    d_pad = tab_flat.shape[1]

    # Balanced time tiles: minimise zero-padded MXU rows (kernel is MXU-bound),
    # keep tiles a multiple of 8 sublanes and <= t_blk_max.
    n_t = max(1, _cdiv(max(T, 1), t_blk_max))
    t_blk = _round_up(_cdiv(max(T, 1), n_t), 8)
    t_pad = n_t * t_blk

    # D tile: largest multiple of 128 <= d_tile_max that divides d_pad (so no
    # ragged D blocks); becomes the OUTER grid axis so each table stripe is
    # DMA'd exactly once and reused across every time tile.
    if d_pad <= d_tile_max:
        d_tile = d_pad
    else:
        d_tile = 128
        for cand in range(d_tile_max, 127, -128):
            if d_pad % cand == 0:
                d_tile = cand
                break
    n_d = d_pad // d_tile

    # Explicit VMEM budget from the actual footprint (+ headroom), instead of
    # relying on the 16/32 MiB default scoped limit.
    itemsize_tab = jnp.dtype(tab_flat.dtype).itemsize
    itemsize_out = jnp.dtype(out_dtype).itemsize
    tab_bytes = k_rows * d_tile * itemsize_tab
    out_bytes = t_blk * d_tile * itemsize_out
    idx_bytes = t_blk * n_lvl * 4
    onehot_bytes = t_blk * max(level_sizes) * itemsize_tab
    acc_bytes = t_blk * d_tile * 4
    footprint = 2 * (tab_bytes + out_bytes + idx_bytes) + onehot_bytes + acc_bytes
    vmem_limit = int(min(64 << 20, max(16 << 20, footprint + (8 << 20))))

    idx_p = idx.astype(jnp.int32)
    if t_pad != T:
        idx_p = jnp.pad(idx_p, ((0, t_pad - T), (0, 0)))

    kernel = functools.partial(_embed_sum_kernel,
                               level_offsets=level_offsets,
                               level_sizes=level_sizes)

    out = pl.pallas_call(
        kernel,
        out_shape=jax.ShapeDtypeStruct((t_pad, d_pad), out_dtype),
        grid_spec=pltpu.PrefetchScalarGridSpec(
            num_scalar_prefetch=0,
            grid=(n_d, n_t),  # d outer: table stripe resident across time tiles
            in_specs=[
                pl.BlockSpec((t_blk, n_lvl), lambda d, t: (t, 0)),
                # Prefix stripe of the flat table; constant row block index so
                # it is only re-fetched when the D stripe changes.
                pl.BlockSpec((k_rows, d_tile), lambda d, t: (0, d)),
            ],
            out_specs=pl.BlockSpec((t_blk, d_tile), lambda d, t: (t, d)),
        ),
        compiler_params=pltpu.CompilerParams(
            dimension_semantics=("parallel", "parallel"),
            vmem_limit_bytes=vmem_limit,
        ),
    )(idx_p, tab_flat)

    if t_pad == T and d_pad == d_out:
        return out  # no wrapper-side HBM recopy when padding was unnecessary
    return out[:T, :d_out]


class AudioEmbedding:
    """JAX/Pallas port of vall_e AudioEmbedding (gather + sum over quant levels)."""

    def __init__(self, l_tokens, token_dim, key,
                 table_dtype=jnp.bfloat16, out_dtype=jnp.float32):
        self.token_dim = token_dim
        self.out_dtype = out_dtype  # set to bf16 if downstream consumes bf16
        keys = jax.random.split(key, len(l_tokens))
        # nn.Embedding default init ~ N(0, 1).  Weights stored bf16 so the
        # one-hot matmul runs on the native bf16 MXU path (differs from the f32
        # PyTorch module only by bf16 rounding of the table entries).
        self.tables = [
            jax.random.normal(k, (n, token_dim), jnp.float32).astype(table_dtype)
            for k, n in zip(keys, l_tokens)
        ]

        d_pad = _round_up(token_dim, 128)
        # Per-level ragged padding: each codebook padded to its OWN multiple of
        # 128 (MXU K = sum round_up(n_k,128), not L * round_up(max n_k,128)).
        nk_pad = [_round_up(n, 128) for n in l_tokens]
        padded = [
            jnp.pad(t, ((0, npk - t.shape[0]), (0, d_pad - token_dim)))
            for t, npk in zip(self.tables, nk_pad)
        ]

        def _offsets(sizes):
            offs, acc = [], 0
            for s in sizes:
                offs.append(acc)
                acc += s
            return tuple(offs)

        # Flat stacked tables for the two forward branches: levels [0:] and [1:].
        self._tabs_flat = jnp.concatenate(padded, axis=0)
        self._sizes = tuple(nk_pad)
        self._offs = _offsets(nk_pad)
        if len(padded) > 1:
            self._tabs_flat_shift = jnp.concatenate(padded[1:], axis=0)
            self._sizes_shift = tuple(nk_pad[1:])
            self._offs_shift = _offsets(nk_pad[1:])
        else:
            self._tabs_flat_shift = None
            self._sizes_shift = ()
            self._offs_shift = ()

    def __call__(self, x_list, quant_levels=None):
        # Resolve the PyTorch branch per item (pure Python glue; quant_levels
        # should be Python ints to avoid a device->host sync).
        specs = []
        for i, xi in enumerate(x_list):
            n_lvl = xi.shape[-1]
            if quant_levels is None and n_lvl > 1:
                specs.append((0, xi))                    # sum_k embeddings[k](xi[:, k])
            elif quant_levels is None or int(quant_levels[i]) == 0:
                specs.append((0, xi[:, :1]))             # embeddings[0](xi[:, 0])
            else:
                specs.append((1, xi))                    # sum_k embeddings[k+1](xi[:, k])

        # Batch items hitting the same (table set, n_levels) into one launch.
        groups = {}
        for i, (start, x_use) in enumerate(specs):
            groups.setdefault((start, x_use.shape[-1]), []).append(i)

        results = [None] * len(x_list)
        for (start, n_lvl), item_ids in groups.items():
            xs = [specs[i][1] for i in item_ids]
            if start == 0:
                tab_flat, offs, sizes = self._tabs_flat, self._offs, self._sizes
            else:
                assert self._tabs_flat_shift is not None
                tab_flat, offs, sizes = (self._tabs_flat_shift,
                                         self._offs_shift, self._sizes_shift)

            if len(xs) == 1:
                # Single item: no concat and no post-hoc offset slicing.
                results[item_ids[0]] = embed_sum(
                    xs[0], tab_flat, offs, sizes, self.token_dim,
                    out_dtype=self.out_dtype)
                continue

            lens = [x.shape[0] for x in xs]
            x_cat = jnp.concatenate(xs, axis=0)
            out = embed_sum(x_cat, tab_flat, offs, sizes, self.token_dim,
                            out_dtype=self.out_dtype)
            off = 0
            for i, ln in zip(item_ids, lens):
                results[i] = out[off:off + ln]
                off += ln
        return results


def _reference(tables, x_list, quant_levels=None):
    """Pure-JAX reference mirroring the PyTorch forward exactly."""
    res_list = []
    for i, xi in enumerate(x_list):
        n_lvl = xi.shape[-1]
        if quant_levels is None and n_lvl > 1:
            x = sum(tables[k][xi[:, k]] for k in range(n_lvl))
        elif quant_levels is None or int(quant_levels[i]) == 0:
            x = tables[0][xi[:, 0]]
        else:
            x = sum(tables[k + 1][xi[:, k]] for k in range(n_lvl))
        res_list.append(x)
    return res_list


if __name__ == "__main__":
    key = jax.random.PRNGKey(0)
    k_mod, k_a1, k_a2, k_b1, k_b2 = jax.random.split(key, 5)

    l_tokens = [256, 200, 256, 128]   # per-level codebook sizes
    token_dim = 64
    mod = AudioEmbedding(l_tokens, token_dim, k_mod)

    # Reference uses the module's (bf16) weights promoted to f32 so the only
    # difference vs the kernel is f32 summation rounding (negligible).
    tabs_f32 = [t.astype(jnp.float32) for t in mod.tables]

    def rand_ids(k, T, sizes):
        """Column j drawn uniformly from [0, sizes[j]) — valid for the table it
        actually indexes in the chosen branch."""
        cols = [jax.random.randint(jax.random.fold_in(k, j), (T, 1), 0, s)
                for j, s in enumerate(sizes)]
        return jnp.concatenate(cols, axis=1).astype(jnp.int32)

    # --- case A: quant_levels=None, multi-level inputs (sum embeddings[k]) ---
    xA = [rand_ids(k_a1, 12, l_tokens[:4]), rand_ids(k_a2, 9, l_tokens[:4])]
    outA = mod(xA, quant_levels=None)
    refA = _reference(tabs_f32, xA, quant_levels=None)

    # --- case B: quant_levels given (NAR-style branches) ---
    # item0: level 0 -> embeddings[0]; item1: 2 levels -> embeddings[1], embeddings[2]
    xB = [rand_ids(k_b1, 10, [l_tokens[0]]),
          rand_ids(k_b2, 7, [l_tokens[1], l_tokens[2]])]
    qB = [0, 2]
    outB = mod(xB, quant_levels=qB)
    refB = _reference(tabs_f32, xB, quant_levels=qB)

    for o, r in zip(outA + outB, refA + refB):
        o = jax.block_until_ready(o)
        assert o.shape == r.shape and o.dtype == r.dtype
        assert jnp.allclose(o, r, atol=1e-5, rtol=1e-5), "mismatch vs reference"

    print("KERNEL_OK")
</pallas_src>

<mosaic_0001>
module attributes {stable_mosaic.version = 11 : i64} {
  func.func @_embed_sum_kernel(%arg0: i32, %arg1: i32, %arg2: memref<24x4xi32, #tpu.memory_space<vmem>>, %arg3: memref<896x128xbf16, #tpu.memory_space<vmem>>, %arg4: memref<24x128xf32, #tpu.memory_space<vmem>>) attributes {dimension_semantics = [#tpu.dimension_semantics<parallel>, #tpu.dimension_semantics<parallel>], iteration_bounds = array<i64: 1, 1>, scalar_prefetch = 0 : i64, scratch_operands = 0 : i64, tpu.core_type = #tpu.core_type<tc>, window_params = [{transform_indices = @transform_0, window_bounds = array<i64: 24, 4>}, {transform_indices = @transform_1, window_bounds = array<i64: 896, 128>}, {transform_indices = @transform_2, window_bounds = array<i64: 24, 128>}]} {
    %c0 = arith.constant 0 : index
    %c0_0 = arith.constant 0 : index
    %0 = vector.load %arg2[%c0, %c0_0] : memref<24x4xi32, #tpu.memory_space<vmem>>, vector<24x4xi32>
    %1 = tpu.iota {dimensions = array<i32: 1>} : vector<24x256xi32>
    %2 = vector.extract_strided_slice %0 {offsets = [0, 0], sizes = [24, 1], strides = [1, 1]} : vector<24x4xi32> to vector<24x1xi32>
    %3 = vector.broadcast %2 : vector<24x1xi32> to vector<24x256xi32>
    %4 = arith.cmpi eq, %3, %1 : vector<24x256xi32>
    %5 = arith.extui %4 : vector<24x256xi1> to vector<24x256xi32>
    %6 = arith.sitofp %5 : vector<24x256xi32> to vector<24x256xf32>
    %7 = arith.truncf %6 : vector<24x256xf32> to vector<24x256xbf16>
    %c0_1 = arith.constant 0 : index
    %c0_2 = arith.constant 0 : index
    %8 = vector.load %arg3[%c0_1, %c0_2] : memref<896x128xbf16, #tpu.memory_space<vmem>>, vector<256x128xbf16>
    %cst = arith.constant dense<0.000000e+00> : vector<24x128xf32>
    %9 = tpu.matmul %7, %8, %cst {dimension_numbers = #tpu.dot_dimension_numbers<[1], [0], [0], [1], [0, 0, 1, 1], [], []>} : vector<24x256xbf16>, vector<256x128xbf16>, vector<24x128xf32> -> vector<24x128xf32>
    %10 = tpu.iota {dimensions = array<i32: 1>} : vector<24x256xi32>
    %11 = vector.extract_strided_slice %0 {offsets = [0, 1], sizes = [24, 1], strides = [1, 1]} : vector<24x4xi32> to vector<24x1xi32>
    %12 = vector.broadcast %11 : vector<24x1xi32> to vector<24x256xi32>
    %13 = arith.cmpi eq, %12, %10 : vector<24x256xi32>
    %14 = arith.extui %13 : vector<24x256xi1> to vector<24x256xi32>
    %15 = arith.sitofp %14 : vector<24x256xi32> to vector<24x256xf32>
    %16 = arith.truncf %15 : vector<24x256xf32> to vector<24x256xbf16>
    %c256 = arith.constant 256 : index
    %c0_3 = arith.constant 0 : index
    %17 = vector.load %arg3[%c256, %c0_3] : memref<896x128xbf16, #tpu.memory_space<vmem>>, vector<256x128xbf16>
    %cst_4 = arith.constant dense<0.000000e+00> : vector<24x128xf32>
    %18 = tpu.matmul %16, %17, %cst_4 {dimension_numbers = #tpu.dot_dimension_numbers<[1], [0], [0], [1], [0, 0, 1, 1], [], []>} : vector<24x256xbf16>, vector<256x128xbf16>, vector<24x128xf32> -> vector<24x128xf32>
    %19 = arith.addf %9, %18 : vector<24x128xf32>
    %20 = tpu.iota {dimensions = array<i32: 1>} : vector<24x256xi32>
    %21 = vector.extract_strided_slice %0 {offsets = [0, 2], sizes = [24, 1], strides = [1, 1]} : vector<24x4xi32> to vector<24x1xi32>
    %22 = vector.broadcast %21 : vector<24x1xi32> to vector<24x256xi32>
    %23 = arith.cmpi eq, %22, %20 : vector<24x256xi32>
    %24 = arith.extui %23 : vector<24x256xi1> to vector<24x256xi32>
    %25 = arith.sitofp %24 : vector<24x256xi32> to vector<24x256xf32>
    %26 = arith.truncf %25 : vector<24x256xf32> to vector<24x256xbf16>
    %c512 = arith.constant 512 : index
    %c0_5 = arith.constant 0 : index
    %27 = vector.load %arg3[%c512, %c0_5] : memref<896x128xbf16, #tpu.memory_space<vmem>>, vector<256x128xbf16>
    %cst_6 = arith.constant dense<0.000000e+00> : vector<24x128xf32>
    %28 = tpu.matmul %26, %27, %cst_6 {dimension_numbers = #tpu.dot_dimension_numbers<[1], [0], [0], [1], [0, 0, 1, 1], [], []>} : vector<24x256xbf16>, vector<256x128xbf16>, vector<24x128xf32> -> vector<24x128xf32>
    %29 = arith.addf %19, %28 : vector<24x128xf32>
    %30 = tpu.iota {dimensions = array<i32: 1>} : vector<24x128xi32>
    %31 = vector.extract_strided_slice %0 {offsets = [0, 3], sizes = [24, 1], strides = [1, 1]} : vector<24x4xi32> to vector<24x1xi32>
    %32 = vector.broadcast %31 : vector<24x1xi32> to vector<24x128xi32>
    %33 = arith.cmpi eq, %32, %30 : vector<24x128xi32>
    %34 = arith.extui %33 : vector<24x128xi1> to vector<24x128xi32>
    %35 = arith.sitofp %34 : vector<24x128xi32> to vector<24x128xf32>
    %36 = arith.truncf %35 : vector<24x128xf32> to vector<24x128xbf16>
    %c768 = arith.constant 768 : index
    %c0_7 = arith.constant 0 : index
    %37 = vector.load %arg3[%c768, %c0_7] : memref<896x128xbf16, #tpu.memory_space<vmem>>, vector<128x128xbf16>
    %cst_8 = arith.constant dense<0.000000e+00> : vector<24x128xf32>
    %38 = tpu.matmul %36, %37, %cst_8 {dimension_numbers = #tpu.dot_dimension_numbers<[1], [0], [0], [1], [0, 0, 1, 1], [], []>} : vector<24x128xbf16>, vector<128x128xbf16>, vector<24x128xf32> -> vector<24x128xf32>
    %39 = arith.addf %29, %38 : vector<24x128xf32>
    %c0_9 = arith.constant 0 : index
    %c0_10 = arith.constant 0 : index
    %40 = vector.load %arg4[%c0_9, %c0_10] : memref<24x128xf32, #tpu.memory_space<vmem>>, vector<24x128xf32>
    tpu.vector_store %arg4[%c0_9, %c0_10], %39 {strides = array<i32>} : memref<24x128xf32, #tpu.memory_space<vmem>>, vector<24x128xf32>,
    return
  }
  func.func @transform_0(%arg0: i32, %arg1: i32) -> (i32, i32) {
    %c0_i32 = arith.constant 0 : i32
    %c0_i32_0 = arith.constant 0 : i32
    return %arg1, %c0_i32 : i32, i32
  }
  func.func @transform_1(%arg0: i32, %arg1: i32) -> (i32, i32) {
    %c0_i32 = arith.constant 0 : i32
    %c0_i32_0 = arith.constant 0 : i32
    return %c0_i32, %arg0 : i32, i32
  }
  func.func @transform_2(%arg0: i32, %arg1: i32) -> (i32, i32) {
    %c0_i32 = arith.constant 0 : i32
    return %arg1, %arg0 : i32, i32
  }
}

</mosaic_0001>

<llo_original>
// kernel: tpu_custom_call.1
$region0: #{tpu_custom_call.1}
  #allocation0 [shape = 'u32[]', space=smem, size = 0x4, offset = 0x4, fixed_abs, tag = 'smem constant byte address 0x4 - core index']
  #allocation1 [shape = 'u32[144,128]{1,0:T(1,128)}', space=vmem, size = 0x12000, scoped, tag = 'internal scratch']
  %s0 = inlined_call_operand.vmem [shape: s32[24,4], index: 0, kind: input, shape index: {}]
  %s1 = inlined_call_operand.hbm [shape: bf16[896,128], index: 1, kind: input, shape index: {}]
  %s2 = inlined_call_operand.hbm [shape: f32[24,128], index: 2, kind: output, shape index: {}]
  %s3 = sld [smem:[#allocation0]]
  $region22: #{tpu_custom_call.1} parent=0
    _
  %s5 = ssub.s32 1, %s3
  %s6 = scalar_select 0, %s5, %s3
  $region1: #{tpu_custom_call.1} parent=0
    #allocation2 [shape = 'u8[229376]{0}', space=vmem, size = 0x38000, scoped, tag = 'input window, operand 1, single buffered']
    #allocation3 [shape = 's32[1]{0}', space=sflag, size = 0x4, scoped, tag = 'scoped memory for tpu_custom_call.1']
    #allocation4 [shape = 's32[1]{0}', space=sflag, size = 0x4, scoped, tag = 'scoped memory for tpu_custom_call.1']
    #allocation5 [shape = 'u8[12288]{0}', space=vmem, size = 0x3000, scoped, tag = 'output window, operand 0, single buffered']
    %7 = vsyncpa [#allocation3], 0
    %8 = vsyncpa [#allocation4], 0
    // Predicated region
    $region2: #{tpu_custom_call.1} parent=1 // pred_check
      _
    $region3: #{tpu_custom_call.1} parent=1 // pred_check_branch
      %10 = sbr.rel (0) target = $region5
    $region4: #{tpu_custom_call.1} parent=1 // pred_region
      _
    $region5: #{tpu_custom_call.1} parent=1 // pred_fallthru
      _
    // Predicated region
    $region6: #{tpu_custom_call.1} parent=1 // pred_check
      _
    $region7: #{tpu_custom_call.1} parent=1 // pred_check_branch
      %12 = sbr.rel (0) target = $region9
    $region8: #{tpu_custom_call.1} parent=1 // pred_region
      %s14 = ssub.s32 7168, 7168
      %15 = vsyncadd [#allocation3], %s14
      %s16 = sshll.u32 [#allocation2], 4
      %s17 = int_to_ptr.vmem [resolvable:$true] %s16
      %22 = dma.hbm_to_vmem [thread:$0]  %s1, 7168, %s17, [#allocation3], 64, 64, 4
    $region9: #{tpu_custom_call.1} parent=1 // pred_fallthru
      _
    // Predicated region
    $region10: #{tpu_custom_call.1} parent=1 // pred_check
      _
    $region11: #{tpu_custom_call.1} parent=1 // pred_check_branch
      %24 = sbr.rel (0) target = $region13
    $region12: #{tpu_custom_call.1} parent=1 // pred_region
      %25 = dma.done [#allocation3], 7168
    $region13: #{tpu_custom_call.1} parent=1 // pred_fallthru
      _
    %v27 = vld [vmem:[%s0] sm:$0xff]
    %v28 = vld [vmem:[%s0 + $0x8] sm:$0xff]
    %v29 = vld [vmem:[%s0 + $0x10] sm:$0xff]
    %v30 = vlaneseq
    %v31 = vand.u32 %v30, 127
    %v32 = vadd.s32 %v31, 128
    %33 = vset.pattern.permute.xlu0 0
    %34 = vperm.xlu0 %33, %v27
    %v35 = vpop.permute.xlu0 %34
    %36 = vset.pattern.permute.xlu0 0
    %37 = vperm.xlu0 %36, %v28
    %v38 = vpop.permute.xlu0 %37
    %39 = vset.pattern.permute.xlu0 0
    %40 = vperm.xlu0 %39, %v29
    %v41 = vpop.permute.xlu0 %40
    %vm42 = vcmp.eq.s32.totalorder %v35, %v31
    %vm43 = vcmp.eq.s32.totalorder %v35, %v32
    %vm44 = vcmp.eq.s32.totalorder %v38, %v31
    %vm45 = vcmp.eq.s32.totalorder %v38, %v32
    %vm46 = vcmp.eq.s32.totalorder %v41, %v31
    %vm47 = vcmp.eq.s32.totalorder %v41, %v32
    %v48 = vsel %vm42, 1, 0
    %v49 = vsel %vm43, 1, 0
    %v50 = vsel %vm44, 1, 0
    %v51 = vsel %vm45, 1, 0
    %v52 = vsel %vm46, 1, 0
    %v53 = vsel %vm47, 1, 0
    %v54 = vcvt.s32.f32 %v48
    %v55 = vcvt.s32.f32 %v49
    %v56 = vcvt.s32.f32 %v50
    %v57 = vcvt.s32.f32 %v51
    %v58 = vcvt.s32.f32 %v52
    %v59 = vcvt.s32.f32 %v53
    %v60 = vpack.c.bf16 %v56, %v54
    %v61 = vpack.c.bf16 %v57, %v55
    %v62 = vpack.c.bf16 %v58, %v58
    %v63 = vpack.c.bf16 %v59, %v59
    %v64 = vld [vmem:[#allocation2] sm:$0xf]
    %v65 = vld [vmem:[#allocation2 + $0x4] sm:$0xf]
    %v66 = vld [vmem:[#allocation2 + $0x8] sm:$0xf]
    %v67 = vld [vmem:[#allocation2 + $0xc] sm:$0xf]
    %v68 = vld [vmem:[#allocation2 + $0x10] sm:$0xf]
    %v69 = vld [vmem:[#allocation2 + $0x14] sm:$0xf]
    %v70 = vld [vmem:[#allocation2 + $0x18] sm:$0xf]
    %v71 = vld [vmem:[#allocation2 + $0x1c] sm:$0xf]
    %v72 = vld [vmem:[#allocation2 + $0x20] sm:$0xf]
    %v73 = vld [vmem:[#allocation2 + $0x24] sm:$0xf]
    %v74 = vld [vmem:[#allocation2 + $0x28] sm:$0xf]
    %v75 = vld [vmem:[#allocation2 + $0x2c] sm:$0xf]
    %v76 = vld [vmem:[#allocation2 + $0x30] sm:$0xf]
    %v77 = vld [vmem:[#allocation2 + $0x34] sm:$0xf]
    %v78 = vld [vmem:[#allocation2 + $0x38] sm:$0xf]
    %v79 = vld [vmem:[#allocation2 + $0x3c] sm:$0xf]
    %v80 = vld [vmem:[#allocation2 + $0x40] sm:$0xf]
    %v81 = vld [vmem:[#allocation2 + $0x44] sm:$0xf]
    %v82 = vld [vmem:[#allocation2 + $0x48] sm:$0xf]
    %v83 = vld [vmem:[#allocation2 + $0x4c] sm:$0xf]
    %v84 = vld [vmem:[#allocation2 + $0x50] sm:$0xf]
    %v85 = vld [vmem:[#allocation2 + $0x54] sm:$0xf]
    %v86 = vld [vmem:[#allocation2 + $0x58] sm:$0xf]
    %v87 = vld [vmem:[#allocation2 + $0x5c] sm:$0xf]
    %v88 = vld [vmem:[#allocation2 + $0x60] sm:$0xf]
    %v89 = vld [vmem:[#allocation2 + $0x64] sm:$0xf]
    %v90 = vld [vmem:[#allocation2 + $0x68] sm:$0xf]
    %v91 = vld [vmem:[#allocation2 + $0x6c] sm:$0xf]
    %v92 = vld [vmem:[#allocation2 + $0x70] sm:$0xf]
    %v93 = vld [vmem:[#allocation2 + $0x74] sm:$0xf]
    %v94 = vld [vmem:[#allocation2 + $0x78] sm:$0xf]
    %v95 = vld [vmem:[#allocation2 + $0x7c] sm:$0xf]
    %96 = vset.pattern.permute.xlu0 1
    %97 = vperm.xlu0 %96, %v27
    %v98 = vpop.permute.xlu0 %97
    %99 = vset.pattern.permute.xlu0 1
    %100 = vperm.xlu0 %99, %v28
    %v101 = vpop.permute.xlu0 %100
    %102 = vset.pattern.permute.xlu0 1
    %103 = vperm.xlu0 %102, %v29
    %v104 = vpop.permute.xlu0 %103
    %vm105 = vcmp.eq.s32.totalorder %v98, %v31
    %vm106 = vcmp.eq.s32.totalorder %v98, %v32
    %vm107 = vcmp.eq.s32.totalorder %v101, %v31
    %vm108 = vcmp.eq.s32.totalorder %v101, %v32
    %vm109 = vcmp.eq.s32.totalorder %v104, %v31
    %vm110 = vcmp.eq.s32.totalorder %v104, %v32
    %v111 = vsel %vm105, 1, 0
    %v112 = vsel %vm106, 1, 0
    %v113 = vsel %vm107, 1, 0
    %v114 = vsel %vm108, 1, 0
    %v115 = vsel %vm109, 1, 0
    %v116 = vsel %vm110, 1, 0
    %v117 = vcvt.s32.f32 %v111
    %v118 = vcvt.s32.f32 %v112
    %v119 = vcvt.s32.f32 %v113
    %v120 = vcvt.s32.f32 %v114
    %v121 = vcvt.s32.f32 %v115
    %v122 = vcvt.s32.f32 %v116
    %v123 = vpack.c.bf16 %v119, %v117
    %v124 = vpack.c.bf16 %v120, %v118
    %v125 = vpack.c.bf16 %v121, %v121
    %v126 = vpack.c.bf16 %v122, %v122
    %v127 = vld [vmem:[#allocation2 + $0x80] sm:$0xf]
    %v128 = vld [vmem:[#allocation2 + $0x84] sm:$0xf]
    %v129 = vld [vmem:[#allocation2 + $0x88] sm:$0xf]
    %v130 = vld [vmem:[#allocation2 + $0x8c] sm:$0xf]
    %v131 = vld [vmem:[#allocation2 + $0x90] sm:$0xf]
    %v132 = vld [vmem:[#allocation2 + $0x94] sm:$0xf]
    %v133 = vld [vmem:[#allocation2 + $0x98] sm:$0xf]
    %v134 = vld [vmem:[#allocation2 + $0x9c] sm:$0xf]
    %v135 = vld [vmem:[#allocation2 + $0xa0] sm:$0xf]
    %v136 = vld [vmem:[#allocation2 + $0xa4] sm:$0xf]
    %v137 = vld [vmem:[#allocation2 + $0xa8] sm:$0xf]
    %v138 = vld [vmem:[#allocation2 + $0xac] sm:$0xf]
    %v139 = vld [vmem:[#allocation2 + $0xb0] sm:$0xf]
    %v140 = vld [vmem:[#allocation2 + $0xb4] sm:$0xf]
    %v141 = vld [vmem:[#allocation2 + $0xb8] sm:$0xf]
    %v142 = vld [vmem:[#allocation2 + $0xbc] sm:$0xf]
    %v143 = vld [vmem:[#allocation2 + $0xc0] sm:$0xf]
    %v144 = vld [vmem:[#allocation2 + $0xc4] sm:$0xf]
    %v145 = vld [vmem:[#allocation2 + $0xc8] sm:$0xf]
    %v146 = vld [vmem:[#allocation2 + $0xcc] sm:$0xf]
    %v147 = vld [vmem:[#allocation2 + $0xd0] sm:$0xf]
    %v148 = vld [vmem:[#allocation2 + $0xd4] sm:$0xf]
    %v149 = vld [vmem:[#allocation2 + $0xd8] sm:$0xf]
    %v150 = vld [vmem:[#allocation2 + $0xdc] sm:$0xf]
    %v151 = vld [vmem:[#allocation2 + $0xe0] sm:$0xf]
    %v152 = vld [vmem:[#allocation2 + $0xe4] sm:$0xf]
    %v153 = vld [vmem:[#allocation2 + $0xe8] sm:$0xf]
    %v154 = vld [vmem:[#allocation2 + $0xec] sm:$0xf]
    %v155 = vld [vmem:[#allocation2 + $0xf0] sm:$0xf]
    %v156 = vld [vmem:[#allocation2 + $0xf4] sm:$0xf]
    %v157 = vld [vmem:[#allocation2 + $0xf8] sm:$0xf]
    %v158 = vld [vmem:[#allocation2 + $0xfc] sm:$0xf]
    %v191 = vunpack.c.l.b16 %v127
    %v192 = vunpack.c.l.b16 %v128
    %v193 = vunpack.c.l.b16 %v129
    %v194 = vunpack.c.l.b16 %v130
    %v195 = vunpack.c.l.b16 %v131
    %v196 = vunpack.c.l.b16 %v132
    %v197 = vunpack.c.l.b16 %v133
    %v198 = vunpack.c.l.b16 %v134
    %v199 = vunpack.c.l.b16 %v135
    %v200 = vunpack.c.l.b16 %v136
    %v201 = vunpack.c.l.b16 %v137
    %v202 = vunpack.c.l.b16 %v138
    %v203 = vunpack.c.l.b16 %v139
    %v204 = vunpack.c.l.b16 %v140
    %v205 = vunpack.c.l.b16 %v141
    %v206 = vunpack.c.l.b16 %v142
    %v207 = vunpack.c.l.b16 %v143
    %v208 = vunpack.c.l.b16 %v144
    %v209 = vunpack.c.l.b16 %v145
    %v210 = vunpack.c.l.b16 %v146
    %v211 = vunpack.c.l.b16 %v147
    %v212 = vunpack.c.l.b16 %v148
    %v213 = vunpack.c.l.b16 %v149
    %v214 = vunpack.c.l.b16 %v150
    %v215 = vunpack.c.l.b16 %v151
    %v216 = vunpack.c.l.b16 %v152
    %v217 = vunpack.c.l.b16 %v153
    %v218 = vunpack.c.l.b16 %v154
    %v219 = vunpack.c.l.b16 %v155
    %v220 = vunpack.c.l.b16 %v156
    %v221 = vunpack.c.l.b16 %v157
    %v222 = vunpack.c.l.b16 %v158
    %v223 = vpack.c.b16 %v192, %v191
    %v224 = vpack.c.b16 %v194, %v193
    %v225 = vpack.c.b16 %v196, %v195
    %v226 = vpack.c.b16 %v198, %v197
    %v227 = vpack.c.b16 %v200, %v199
    %v228 = vpack.c.b16 %v202, %v201
    %v229 = vpack.c.b16 %v204, %v203
    %v230 = vpack.c.b16 %v206, %v205
    %v231 = vpack.c.b16 %v208, %v207
    %v232 = vpack.c.b16 %v210, %v209
    %v233 = vpack.c.b16 %v212, %v211
    %v234 = vpack.c.b16 %v214, %v213
    %v235 = vpack.c.b16 %v216, %v215
    %v236 = vpack.c.b16 %v218, %v217
    %v237 = vpack.c.b16 %v220, %v219
    %v238 = vpack.c.b16 %v222, %v221
    %255 = vmatprep.subr.bf16.mxu0 0
    %256 = vmatpush1.bf16.msra.mxu0 %v223
    %257 = vmatprep.subr.bf16.mxu0 0
    %258 = vmatpush1.bf16.msra.mxu0 %v224
    %259 = vmatprep.subr.bf16.mxu0 0
    %260 = vmatpush1.bf16.msra.mxu0 %v225
    %261 = vmatprep.subr.bf16.mxu0 0
    %262 = vmatpush1.bf16.msra.mxu0 %v226
    %263 = vmatprep.subr.bf16.mxu0 0
    %264 = vmatpush1.bf16.msra.mxu0 %v227
    %265 = vmatprep.subr.bf16.mxu0 0
    %266 = vmatpush1.bf16.msra.mxu0 %v228
    %267 = vmatprep.subr.bf16.mxu0 0
    %268 = vmatpush1.bf16.msra.mxu0 %v229
    %269 = vmatprep.subr.bf16.mxu0 0
    %270 = vmatpush1.bf16.msra.mxu0 %v230
    %271 = vmatprep.subr.bf16.mxu0 0
    %272 = vmatpush1.bf16.msra.mxu0 %v231
    %273 = vmatprep.subr.bf16.mxu0 0
    %274 = vmatpush1.bf16.msra.mxu0 %v232
    %275 = vmatprep.subr.bf16.mxu0 0
    %276 = vmatpush1.bf16.msra.mxu0 %v233
    %277 = vmatprep.subr.bf16.mxu0 0
    %278 = vmatpush1.bf16.msra.mxu0 %v234
    %279 = vmatprep.subr.bf16.mxu0 0
    %280 = vmatpush1.bf16.msra.mxu0 %v235
    %281 = vmatprep.subr.bf16.mxu0 0
    %282 = vmatpush1.bf16.msra.mxu0 %v236
    %283 = vmatprep.subr.bf16.mxu0 0
    %284 = vmatpush1.bf16.msra.mxu0 %v237
    %285 = vmatprep.subr.bf16.mxu0 0
    %286 = vmatpush1.bf16.msra.mxu0 %v238
    %287 = vmatprep.mubr.bf16.mxu0 %v124
    %288 = vmatmul.mubr.bf16.gmra.mrb[0].mxu0 %v123
    %v289 = vpop.f32.mrb[0].mxu0
    %v290 = vadd.f32 0.0, %v289
    %v291 = vpop.f32.mrb[0].mxu0
    %v292 = vpop.f32.mrb[0].mxu0
    %v293 = vadd.f32 0.0, %v292
    %v294 = vpop.f32.mrb[0].mxu0
    %295 = vmatprep.mubr.bf16.mxu0 %v126
    %296 = vmatmul.mubr.bf16.gmra.mrb[0].mxu0 %v125
    %v297 = vpop.f32.mrb[0].mxu0
    %v298 = vadd.f32 0.0, %v297
    %v299 = vpop.f32.mrb[0].mxu0
    %v300 = vpop.f32.mrb[0].mxu0
    %v301 = vpop.f32.mrb[0].mxu0
    %302 = vdwg.mxu0
    %v335 = vunpack.c.l.b16 %v64
    %v336 = vunpack.c.l.b16 %v65
    %v337 = vunpack.c.l.b16 %v66
    %v338 = vunpack.c.l.b16 %v67
    %v339 = vunpack.c.l.b16 %v68
    %v340 = vunpack.c.l.b16 %v69
    %v341 = vunpack.c.l.b16 %v70
    %v342 = vunpack.c.l.b16 %v71
    %v343 = vunpack.c.l.b16 %v72
    %v344 = vunpack.c.l.b16 %v73
    %v345 = vunpack.c.l.b16 %v74
    %v346 = vunpack.c.l.b16 %v75
    %v347 = vunpack.c.l.b16 %v76
    %v348 = vunpack.c.l.b16 %v77
    %v349 = vunpack.c.l.b16 %v78
    %v350 = vunpack.c.l.b16 %v79
    %v351 = vunpack.c.l.b16 %v80
    %v352 = vunpack.c.l.b16 %v81
    %v353 = vunpack.c.l.b16 %v82
    %v354 = vunpack.c.l.b16 %v83
    %v355 = vunpack.c.l.b16 %v84
    %v356 = vunpack.c.l.b16 %v85
    %v357 = vunpack.c.l.b16 %v86
    %v358 = vunpack.c.l.b16 %v87
    %v359 = vunpack.c.l.b16 %v88
    %v360 = vunpack.c.l.b16 %v89
    %v361 = vunpack.c.l.b16 %v90
    %v362 = vunpack.c.l.b16 %v91
    %v363 = vunpack.c.l.b16 %v92
    %v364 = vunpack.c.l.b16 %v93
    %v365 = vunpack.c.l.b16 %v94
    %v366 = vunpack.c.l.b16 %v95
    %v367 = vpack.c.b16 %v336, %v335
    %v368 = vpack.c.b16 %v338, %v337
    %v369 = vpack.c.b16 %v340, %v339
    %v370 = vpack.c.b16 %v342, %v341
    %v371 = vpack.c.b16 %v344, %v343
    %v372 = vpack.c.b16 %v346, %v345
    %v373 = vpack.c.b16 %v348, %v347
    %v374 = vpack.c.b16 %v350, %v349
    %v375 = vpack.c.b16 %v352, %v351
    %v376 = vpack.c.b16 %v354, %v353
    %v377 = vpack.c.b16 %v356, %v355
    %v378 = vpack.c.b16 %v358, %v357
    %v379 = vpack.c.b16 %v360, %v359
    %v380 = vpack.c.b16 %v362, %v361
    %v381 = vpack.c.b16 %v364, %v363
    %v382 = vpack.c.b16 %v366, %v365
    %399 = vmatprep.subr.bf16.mxu0 0
    %400 = vmatpush1.bf16.msra.mxu0 %v367
    %401 = vmatprep.subr.bf16.mxu0 0
    %402 = vmatpush1.bf16.msra.mxu0 %v368
    %403 = vmatprep.subr.bf16.mxu0 0
    %404 = vmatpush1.bf16.msra.mxu0 %v369
    %405 = vmatprep.subr.bf16.mxu0 0
    %406 = vmatpush1.bf16.msra.mxu0 %v370
    %407 = vmatprep.subr.bf16.mxu0 0
    %408 = vmatpush1.bf16.msra.mxu0 %v371
    %409 = vmatprep.subr.bf16.mxu0 0
    %410 = vmatpush1.bf16.msra.mxu0 %v372
    %411 = vmatprep.subr.bf16.mxu0 0
    %412 = vmatpush1.bf16.msra.mxu0 %v373
    %413 = vmatprep.subr.bf16.mxu0 0
    %414 = vmatpush1.bf16.msra.mxu0 %v374
    %415 = vmatprep.subr.bf16.mxu0 0
    %416 = vmatpush1.bf16.msra.mxu0 %v375
    %417 = vmatprep.subr.bf16.mxu0 0
    %418 = vmatpush1.bf16.msra.mxu0 %v376
    %419 = vmatprep.subr.bf16.mxu0 0
    %420 = vmatpush1.bf16.msra.mxu0 %v377
    %421 = vmatprep.subr.bf16.mxu0 0
    %422 = vmatpush1.bf16.msra.mxu0 %v378
    %423 = vmatprep.subr.bf16.mxu0 0
    %424 = vmatpush1.bf16.msra.mxu0 %v379
    %425 = vmatprep.subr.bf16.mxu0 0
    %426 = vmatpush1.bf16.msra.mxu0 %v380
    %427 = vmatprep.subr.bf16.mxu0 0
    %428 = vmatpush1.bf16.msra.mxu0 %v381
    %429 = vmatprep.subr.bf16.mxu0 0
    %430 = vmatpush1.bf16.msra.mxu0 %v382
    %431 = vmatprep.mubr.bf16.mxu0 %v61
    %432 = vmatmul.mubr.bf16.gmra.mrb[0].mxu0 %v60
    %v433 = vpop.f32.mrb[0].mxu0
    %v434 = vadd.f32 %v290, %v433
    %v435 = vpop.f32.mrb[0].mxu0
    %v436 = vpop.f32.mrb[0].mxu0
    %v437 = vadd.f32 %v293, %v436
    %v438 = vpop.f32.mrb[0].mxu0
    %439 = vmatprep.mubr.bf16.mxu0 %v63
    %440 = vmatmul.mubr.bf16.gmra.mrb[0].mxu0 %v62
    %v441 = vpop.f32.mrb[0].mxu0
    %v442 = vadd.f32 %v298, %v441
    %v443 = vpop.f32.mrb[0].mxu0
    %v444 = vpop.f32.mrb[0].mxu0
    %v445 = vpop.f32.mrb[0].mxu0
    %446 = vdwg.mxu0
    %447 = vset.pattern.permute.xlu0 2
    %448 = vperm.xlu0 %447, %v27
    %v449 = vpop.permute.xlu0 %448
    %450 = vset.pattern.permute.xlu0 2
    %451 = vperm.xlu0 %450, %v28
    %v452 = vpop.permute.xlu0 %451
    %453 = vset.pattern.permute.xlu0 2
    %454 = vperm.xlu0 %453, %v29
    %v455 = vpop.permute.xlu0 %454
    %vm456 = vcmp.eq.s32.totalorder %v449, %v31
    %vm457 = vcmp.eq.s32.totalorder %v449, %v32
    %vm458 = vcmp.eq.s32.totalorder %v452, %v31
    %vm459 = vcmp.eq.s32.totalorder %v452, %v32
    %vm460 = vcmp.eq.s32.totalorder %v455, %v31
    %vm461 = vcmp.eq.s32.totalorder %v455, %v32
    %v462 = vsel %vm456, 1, 0
    %v463 = vsel %vm457, 1, 0
    %v464 = vsel %vm458, 1, 0
    %v465 = vsel %vm459, 1, 0
    %v466 = vsel %vm460, 1, 0
    %v467 = vsel %vm461, 1, 0
    %v468 = vcvt.s32.f32 %v462
    %v469 = vcvt.s32.f32 %v463
    %v470 = vcvt.s32.f32 %v464
    %v471 = vcvt.s32.f32 %v465
    %v472 = vcvt.s32.f32 %v466
    %v473 = vcvt.s32.f32 %v467
    %v474 = vpack.c.bf16 %v470, %v468
    %v475 = vpack.c.bf16 %v471, %v469
    %v476 = vpack.c.bf16 %v472, %v472
    %v477 = vpack.c.bf16 %v473, %v473
    %v478 = vld [vmem:[#allocation2 + $0x100] sm:$0xf]
    %v479 = vld [vmem:[#allocation2 + $0x104] sm:$0xf]
    %v480 = vld [vmem:[#allocation2 + $0x108] sm:$0xf]
    %v481 = vld [vmem:[#allocation2 + $0x10c] sm:$0xf]
    %v482 = vld [vmem:[#allocation2 + $0x110] sm:$0xf]
    %v483 = vld [vmem:[#allocation2 + $0x114] sm:$0xf]
    %v484 = vld [vmem:[#allocation2 + $0x118] sm:$0xf]
    %v485 = vld [vmem:[#allocation2 + $0x11c] sm:$0xf]
    %v486 = vld [vmem:[#allocation2 + $0x120] sm:$0xf]
    %v487 = vld [vmem:[#allocation2 + $0x124] sm:$0xf]
    %v488 = vld [vmem:[#allocation2 + $0x128] sm:$0xf]
    %v489 = vld [vmem:[#allocation2 + $0x12c] sm:$0xf]
    %v490 = vld [vmem:[#allocation2 + $0x130] sm:$0xf]
    %v491 = vld [vmem:[#allocation2 + $0x134] sm:$0xf]
    %v492 = vld [vmem:[#allocation2 + $0x138] sm:$0xf]
    %v493 = vld [vmem:[#allocation2 + $0x13c] sm:$0xf]
    %v494 = vld [vmem:[#allocation2 + $0x140] sm:$0xf]
    %v495 = vld [vmem:[#allocation2 + $0x144] sm:$0xf]
    %v496 = vld [vmem:[#allocation2 + $0x148] sm:$0xf]
    %v497 = vld [vmem:[#allocation2 + $0x14c] sm:$0xf]
    %v498 = vld [vmem:[#allocation2 + $0x150] sm:$0xf]
    %v499 = vld [vmem:[#allocation2 + $0x154] sm:$0xf]
    %v500 = vld [vmem:[#allocation2 + $0x158] sm:$0xf]
    %v501 = vld [vmem:[#allocation2 + $0x15c] sm:$0xf]
    %v502 = vld [vmem:[#allocation2 + $0x160] sm:$0xf]
    %v503 = vld [vmem:[#allocation2 + $0x164] sm:$0xf]
    %v504 = vld [vmem:[#allocation2 + $0x168] sm:$0xf]
    %v505 = vld [vmem:[#allocation2 + $0x16c] sm:$0xf]
    %v506 = vld [vmem:[#allocation2 + $0x170] sm:$0xf]
    %v507 = vld [vmem:[#allocation2 + $0x174] sm:$0xf]
    %v508 = vld [vmem:[#allocation2 + $0x178] sm:$0xf]
    %v509 = vld [vmem:[#allocation2 + $0x17c] sm:$0xf]
    %v542 = vunpack.c.l.b16 %v478
    %v543 = vunpack.c.l.b16 %v479
    %v544 = vunpack.c.l.b16 %v480
    %v545 = vunpack.c.l.b16 %v481
    %v546 = vunpack.c.l.b16 %v482
    %v547 = vunpack.c.l.b16 %v483
    %v548 = vunpack.c.l.b16 %v484
    %v549 = vunpack.c.l.b16 %v485
    %v550 = vunpack.c.l.b16 %v486
    %v551 = vunpack.c.l.b16 %v487
    %v552 = vunpack.c.l.b16 %v488
    %v553 = vunpack.c.l.b16 %v489
    %v554 = vunpack.c.l.b16 %v490
    %v555 = vunpack.c.l.b16 %v491
    %v556 = vunpack.c.l.b16 %v492
    %v557 = vunpack.c.l.b16 %v493
    %v558 = vunpack.c.l.b16 %v494
    %v559 = vunpack.c.l.b16 %v495
    %v560 = vunpack.c.l.b16 %v496
    %v561 = vunpack.c.l.b16 %v497
    %v562 = vunpack.c.l.b16 %v498
    %v563 = vunpack.c.l.b16 %v499
    %v564 = vunpack.c.l.b16 %v500
    %v565 = vunpack.c.l.b16 %v501
    %v566 = vunpack.c.l.b16 %v502
    %v567 = vunpack.c.l.b16 %v503
    %v568 = vunpack.c.l.b16 %v504
    %v569 = vunpack.c.l.b16 %v505
    %v570 = vunpack.c.l.b16 %v506
    %v571 = vunpack.c.l.b16 %v507
    %v572 = vunpack.c.l.b16 %v508
    %v573 = vunpack.c.l.b16 %v509
    %v574 = vpack.c.b16 %v543, %v542
    %v575 = vpack.c.b16 %v545, %v544
    %v576 = vpack.c.b16 %v547, %v546
    %v577 = vpack.c.b16 %v549, %v548
    %v578 = vpack.c.b16 %v551, %v550
    %v579 = vpack.c.b16 %v553, %v552
    %v580 = vpack.c.b16 %v555, %v554
    %v581 = vpack.c.b16 %v557, %v556
    %v582 = vpack.c.b16 %v559, %v558
    %v583 = vpack.c.b16 %v561, %v560
    %v584 = vpack.c.b16 %v563, %v562
    %v585 = vpack.c.b16 %v565, %v564
    %v586 = vpack.c.b16 %v567, %v566
    %v587 = vpack.c.b16 %v569, %v568
    %v588 = vpack.c.b16 %v571, %v570
    %v589 = vpack.c.b16 %v573, %v572
    %606 = vmatprep.subr.bf16.mxu0 0
    %607 = vmatpush1.bf16.msra.mxu0 %v574
    %608 = vmatprep.subr.bf16.mxu0 0
    %609 = vmatpush1.bf16.msra.mxu0 %v575
    %610 = vmatprep.subr.bf16.mxu0 0
    %611 = vmatpush1.bf16.msra.mxu0 %v576
    %612 = vmatprep.subr.bf16.mxu0 0
    %613 = vmatpush1.bf16.msra.mxu0 %v577
    %614 = vmatprep.subr.bf16.mxu0 0
    %615 = vmatpush1.bf16.msra.mxu0 %v578
    %616 = vmatprep.subr.bf16.mxu0 0
    %617 = vmatpush1.bf16.msra.mxu0 %v579
    %618 = vmatprep.subr.bf16.mxu0 0
    %619 = vmatpush1.bf16.msra.mxu0 %v580
    %620 = vmatprep.subr.bf16.mxu0 0
    %621 = vmatpush1.bf16.msra.mxu0 %v581
    %622 = vmatprep.subr.bf16.mxu0 0
    %623 = vmatpush1.bf16.msra.mxu0 %v582
    %624 = vmatprep.subr.bf16.mxu0 0
    %625 = vmatpush1.bf16.msra.mxu0 %v583
    %626 = vmatprep.subr.bf16.mxu0 0
    %627 = vmatpush1.bf16.msra.mxu0 %v584
    %628 = vmatprep.subr.bf16.mxu0 0
    %629 = vmatpush1.bf16.msra.mxu0 %v585
    %630 = vmatprep.subr.bf16.mxu0 0
    %631 = vmatpush1.bf16.msra.mxu0 %v586
    %632 = vmatprep.subr.bf16.mxu0 0
    %633 = vmatpush1.bf16.msra.mxu0 %v587
    %634 = vmatprep.subr.bf16.mxu0 0
    %635 = vmatpush1.bf16.msra.mxu0 %v588
    %636 = vmatprep.subr.bf16.mxu0 0
    %637 = vmatpush1.bf16.msra.mxu0 %v589
    %638 = vmatprep.mubr.bf16.mxu0 %v475
    %639 = vmatmul.mubr.bf16.gmra.mrb[0].mxu0 %v474
    %v640 = vpop.f32.mrb[0].mxu0
    %v641 = vadd.f32 0.0, %v640
    %v642 = vpop.f32.mrb[0].mxu0
    %v643 = vpop.f32.mrb[0].mxu0
    %v644 = vadd.f32 0.0, %v643
    %v645 = vpop.f32.mrb[0].mxu0
    %646 = vmatprep.mubr.bf16.mxu0 %v477
    %647 = vmatmul.mubr.bf16.gmra.mrb[0].mxu0 %v476
    %v648 = vpop.f32.mrb[0].mxu0
    %v649 = vadd.f32 0.0, %v648
    %v650 = vpop.f32.mrb[0].mxu0
    %v651 = vpop.f32.mrb[0].mxu0
    %v652 = vpop.f32.mrb[0].mxu0
    %653 = vdwg.mxu0
    %v654 = vadd.f32 %v434, %v641
    %v655 = vadd.f32 %v437, %v644
    %v656 = vadd.f32 %v442, %v649
    %657 = vset.pattern.permute.xlu0 3
    %658 = vperm.xlu0 %657, %v27
    %v659 = vpop.permute.xlu0 %658
    %660 = vset.pattern.permute.xlu0 3
    %661 = vperm.xlu0 %660, %v28
    %v662 = vpop.permute.xlu0 %661
    %663 = vset.pattern.permute.xlu0 3
    %664 = vperm.xlu0 %663, %v29
    %v665 = vpop.permute.xlu0 %664
    %vm666 = vcmp.eq.s32.totalorder %v659, %v31
    %vm667 = vcmp.eq.s32.totalorder %v662, %v31
    %vm668 = vcmp.eq.s32.totalorder %v665, %v31
    %v669 = vsel %vm666, 1, 0
    %v670 = vsel %vm667, 1, 0
    %v671 = vsel %vm668, 1, 0
    %v672 = vcvt.s32.f32 %v669
    %v673 = vcvt.s32.f32 %v670
    %v674 = vcvt.s32.f32 %v671
    %v675 = vpack.c.bf16 %v673, %v672
    %v676 = vpack.c.bf16 %v674, %v674
    %v677 = vld [vmem:[#allocation2 + $0x180] sm:$0xf]
    %v678 = vld [vmem:[#allocation2 + $0x184] sm:$0xf]
    %v679 = vld [vmem:[#allocation2 + $0x188] sm:$0xf]
    %v680 = vld [vmem:[#allocation2 + $0x18c] sm:$0xf]
    %v681 = vld [vmem:[#allocation2 + $0x190] sm:$0xf]
    %v682 = vld [vmem:[#allocation2 + $0x194] sm:$0xf]
    %v683 = vld [vmem:[#allocation2 + $0x198] sm:$0xf]
    %v684 = vld [vmem:[#allocation2 + $0x19c] sm:$0xf]
    %v685 = vld [vmem:[#allocation2 + $0x1a0] sm:$0xf]
    %v686 = vld [vmem:[#allocation2 + $0x1a4] sm:$0xf]
    %v687 = vld [vmem:[#allocation2 + $0x1a8] sm:$0xf]
    %v688 = vld [vmem:[#allocation2 + $0x1ac] sm:$0xf]
    %v689 = vld [vmem:[#allocation2 + $0x1b0] sm:$0xf]
    %v690 = vld [vmem:[#allocation2 + $0x1b4] sm:$0xf]
    %v691 = vld [vmem:[#allocation2 + $0x1b8] sm:$0xf]
    %v692 = vld [vmem:[#allocation2 + $0x1bc] sm:$0xf]
    %v709 = vunpack.c.l.b16 %v677
    %v710 = vunpack.c.l.b16 %v678
    %v711 = vunpack.c.l.b16 %v679
    %v712 = vunpack.c.l.b16 %v680
    %v713 = vunpack.c.l.b16 %v681
    %v714 = vunpack.c.l.b16 %v682
    %v715 = vunpack.c.l.b16 %v683
    %v716 = vunpack.c.l.b16 %v684
    %v717 = vunpack.c.l.b16 %v685
    %v718 = vunpack.c.l.b16 %v686
    %v719 = vunpack.c.l.b16 %v687
    %v720 = vunpack.c.l.b16 %v688
    %v721 = vunpack.c.l.b16 %v689
    %v722 = vunpack.c.l.b16 %v690
    %v723 = vunpack.c.l.b16 %v691
    %v724 = vunpack.c.l.b16 %v692
    %v725 = vpack.c.b16 %v710, %v709
    %v726 = vpack.c.b16 %v712, %v711
    %v727 = vpack.c.b16 %v714, %v713
    %v728 = vpack.c.b16 %v716, %v715
    %v729 = vpack.c.b16 %v718, %v717
    %v730 = vpack.c.b16 %v720, %v719
    %v731 = vpack.c.b16 %v722, %v721
    %v732 = vpack.c.b16 %v724, %v723
    %741 = vmatprep.subr.bf16.mxu0 0
    %742 = vmatpush1.bf16.msra.mxu0 %v725
    %743 = vmatprep.subr.bf16.mxu0 0
    %744 = vmatpush1.bf16.msra.mxu0 %v726
    %745 = vmatprep.subr.bf16.mxu0 0
    %746 = vmatpush1.bf16.msra.mxu0 %v727
    %747 = vmatprep.subr.bf16.mxu0 0
    %748 = vmatpush1.bf16.msra.mxu0 %v728
    %749 = vmatprep.subr.bf16.mxu0 0
    %750 = vmatpush1.bf16.msra.mxu0 %v729
    %751 = vmatprep.subr.bf16.mxu0 0
    %752 = vmatpush1.bf16.msra.mxu0 %v730
    %753 = vmatprep.subr.bf16.mxu0 0
    %754 = vmatpush1.bf16.msra.mxu0 %v731
    %755 = vmatprep.subr.bf16.mxu0 0
    %756 = vmatpush1.bf16.msra.mxu0 %v732
    %757 = vmatprep.subr.bf16.mxu0 0
    %758 = vmatpush1.bf16.msra.mxu0 0
    %759 = vmatprep.subr.bf16.mxu0 0
    %760 = vmatpush1.bf16.msra.mxu0 0
    %761 = vmatprep.subr.bf16.mxu0 0
    %762 = vmatpush1.bf16.msra.mxu0 0
    %763 = vmatprep.subr.bf16.mxu0 0
    %764 = vmatpush1.bf16.msra.mxu0 0
    %765 = vmatprep.subr.bf16.mxu0 0
    %766 = vmatpush1.bf16.msra.mxu0 0
    %767 = vmatprep.subr.bf16.mxu0 0
    %768 = vmatpush1.bf16.msra.mxu0 0
    %769 = vmatprep.subr.bf16.mxu0 0
    %770 = vmatpush1.bf16.msra.mxu0 0
    %771 = vmatprep.subr.bf16.mxu0 0
    %772 = vmatpush1.bf16.msra.mxu0 0
    %773 = vmatprep.mubr.bf16.mxu0 0
    %774 = vmatmul.mubr.bf16.gmra.mrb[0].mxu0 %v675
    %v775 = vpop.f32.mrb[0].mxu0
    %v776 = vadd.f32 0.0, %v775
    %v777 = vpop.f32.mrb[0].mxu0
    %v778 = vpop.f32.mrb[0].mxu0
    %v779 = vadd.f32 0.0, %v778
    %v780 = vpop.f32.mrb[0].mxu0
    %781 = vmatprep.mubr.bf16.mxu0 0
    %782 = vmatmul.mubr.bf16.gmra.mrb[0].mxu0 %v676
    %v783 = vpop.f32.mrb[0].mxu0
    %v784 = vadd.f32 0.0, %v783
    %v785 = vpop.f32.mrb[0].mxu0
    %v786 = vpop.f32.mrb[0].mxu0
    %v787 = vpop.f32.mrb[0].mxu0
    %788 = vdwg.mxu0
    %v789 = vadd.f32 %v654, %v776
    %v790 = vadd.f32 %v655, %v779
    %v791 = vadd.f32 %v656, %v784
    %792 = vst [vmem:[#allocation5] sm:$0xff] %v789
    %793 = vst [vmem:[#allocation5 + $0x8] sm:$0xff] %v790
    %794 = vst [vmem:[#allocation5 + $0x10] sm:$0xff] %v791
    // Predicated region
    $region14: #{tpu_custom_call.1} parent=1 // pred_check
      _
    $region15: #{tpu_custom_call.1} parent=1 // pred_check_branch
      %796 = sbr.rel (0) target = $region17
    $region16: #{tpu_custom_call.1} parent=1 // pred_region
      %s798 = ssub.s32 384, 384
      %799 = vsyncadd [#allocation4], %s798
      %s800 = sshll.u32 [#allocation5], 4
      %s801 = int_to_ptr.vmem [resolvable:$true] %s800
      %806 = dma.vmem_to_hbm [thread:$0]  %s801, 384, %s2, [#allocation4], 128, 128, 8
    $region17: #{tpu_custom_call.1} parent=1 // pred_fallthru
      _
    // Predicated region
    $region18: #{tpu_custom_call.1} parent=1 // pred_check
      _
    $region19: #{tpu_custom_call.1} parent=1 // pred_check_branch
      %808 = sbr.rel (0) target = $region21
    $region20: #{tpu_custom_call.1} parent=1 // pred_region
      %809 = dma.done [#allocation4], 384
    $region21: #{tpu_custom_call.1} parent=1 // pred_fallthru
      _
    %810 = vsyncpa [#allocation3], 1
    %811 = vsyncpa [#allocation4], 1

</llo_original>
